<compile_context>
chip_gen: v7x
topology: tpu7x:2x2x1
jax: 0.10.0
libtpu: 0.0.40
codegen_flags: <defaults>
</compile_context>

<pallas_src>
import jax
import jax.numpy as jnp
from jax.experimental import pallas as pl
from jax.experimental.pallas import tpu as pltpu


def simple_rnn_kernel(x_ref, h_ref, wx_ref, wh_ref, b_ref, out_ref, hid_ref):
    """One batch tile; whole feature dims fit in VMEM.

    x_ref   : (bb, input_size)
    h_ref   : (bb, hidden_size)
    wx_ref  : (input_size,  hidden_size + output_size)  -- pre-transposed, x rows
    wh_ref  : (hidden_size, hidden_size + output_size)  -- pre-transposed, h rows
    b_ref   : (1, hidden_size + output_size)            -- fused bias
    out_ref : (bb, output_size)   log-softmax output
    hid_ref : (bb, hidden_size)   new hidden state
    """
    hidden_size = hid_ref.shape[1]

    # fused = [x, h] @ [W_i2h; W_i2o].T + [b_i2h, b_i2o]
    # expressed without concat / transpose: x@Wx + h@Wh + b
    fused = jnp.dot(x_ref[...], wx_ref[...],
                    preferred_element_type=jnp.float32)
    fused = fused + jnp.dot(h_ref[...], wh_ref[...],
                            preferred_element_type=jnp.float32)
    fused = fused + b_ref[...]

    new_hidden = fused[:, :hidden_size]
    logits = fused[:, hidden_size:]

    hid_ref[...] = new_hidden.astype(hid_ref.dtype)

    # LogSoftmax(dim=1), numerically stabilized, in f32.
    m = jnp.max(logits, axis=1, keepdims=True)
    shifted = logits - m
    lse = jnp.log(jnp.sum(jnp.exp(shifted), axis=1, keepdims=True))
    out_ref[...] = (shifted - lse).astype(out_ref.dtype)


def simple_rnn_forward(x, hidden, w_i2h, b_i2h, w_i2o, b_i2o):
    """Weights/biases are stored exactly like nn.Linear (out_f, in_f) / (out_f,)."""
    B, input_size = x.shape
    hidden_size = hidden.shape[1]
    output_size = w_i2o.shape[0]

    # --- one-time host-side weight prep (review items 1-3, bias fold) ------
    # Fused, pre-transposed weight: (in+hid, hid+out)
    w_full = jnp.concatenate([w_i2h, w_i2o], axis=0).T
    w_x = w_full[:input_size]          # (input_size,  hid+out)
    w_h = w_full[input_size:]          # (hidden_size, hid+out)
    b_fused = jnp.concatenate([b_i2h, b_i2o]).reshape(1, hidden_size + output_size)

    # --- batch tiling: parallel axis for v7x's 2 TensorCores ----------------
    # Block batch must be the full B or a multiple of 8 (sublane rule).
    if B <= 256:
        bb = B
    else:
        bb = 256
    grid = (pl.cdiv(B, bb),)

    batch_spec = lambda feat: pl.BlockSpec((bb, feat), lambda i: (i, 0))
    const_spec = lambda shape: pl.BlockSpec(shape, lambda i: (0, 0))

    out_shapes = (
        jax.ShapeDtypeStruct((B, output_size), jnp.float32),
        jax.ShapeDtypeStruct((B, hidden_size), jnp.float32),
    )

    return pl.pallas_call(
        simple_rnn_kernel,
        out_shape=out_shapes,
        grid=grid,
        in_specs=[
            batch_spec(input_size),          # x
            batch_spec(hidden_size),         # hidden
            const_spec(w_x.shape),           # Wx (resident across batch tiles)
            const_spec(w_h.shape),           # Wh
            const_spec(b_fused.shape),       # fused bias
        ],
        out_specs=(
            batch_spec(output_size),
            batch_spec(hidden_size),
        ),
        compiler_params=pltpu.CompilerParams(
            dimension_semantics=("parallel",)),
    )(x, hidden, w_x, w_h, b_fused)


def init_params(key, input_size, hidden_size, output_size):
    """Deterministic nn.Linear-style init (uniform(-1/sqrt(fan_in), +))."""
    combined_size = input_size + hidden_size
    k1, k2, k3, k4 = jax.random.split(key, 4)
    bound = 1.0 / jnp.sqrt(combined_size)
    w_i2h = jax.random.uniform(k1, (hidden_size, combined_size),
                               minval=-bound, maxval=bound, dtype=jnp.float32)
    b_i2h = jax.random.uniform(k2, (hidden_size,),
                               minval=-bound, maxval=bound, dtype=jnp.float32)
    w_i2o = jax.random.uniform(k3, (output_size, combined_size),
                               minval=-bound, maxval=bound, dtype=jnp.float32)
    b_i2o = jax.random.uniform(k4, (output_size,),
                               minval=-bound, maxval=bound, dtype=jnp.float32)
    return w_i2h, b_i2h, w_i2o, b_i2o


if __name__ == "__main__":
    # Small shapes consistent with the module's forward:
    #   x: (batch, input_size), hidden: (batch, hidden_size)
    batch, input_size, hidden_size, output_size = 2, 16, 32, 8

    key = jax.random.PRNGKey(0)
    kx, kh, kp = jax.random.split(key, 3)

    x = jax.random.normal(kx, (batch, input_size), dtype=jnp.float32)
    hidden0 = jnp.zeros((batch, hidden_size), dtype=jnp.float32)  # init_hidden()

    w_i2h, b_i2h, w_i2o, b_i2o = init_params(kp, input_size, hidden_size,
                                             output_size)

    out, new_hidden = simple_rnn_forward(x, hidden0, w_i2h, b_i2h, w_i2o, b_i2o)
    jax.block_until_ready((out, new_hidden))

    # Reference check in plain JAX (same math as the PyTorch forward).
    combined = jnp.concatenate([x, hidden0], axis=1)
    ref_hidden = combined @ w_i2h.T + b_i2h
    ref_logits = combined @ w_i2o.T + b_i2o
    ref_out = jax.nn.log_softmax(ref_logits, axis=1)

    assert jnp.allclose(out, ref_out, atol=1e-5), "log-softmax output mismatch"
    assert jnp.allclose(new_hidden, ref_hidden, atol=1e-5), "hidden mismatch"

    print("KERNEL_OK")
</pallas_src>

<mosaic_0001>
module attributes {stable_mosaic.version = 11 : i64} {
  func.func @simple_rnn_kernel(%arg0: i32, %arg1: memref<2x16xf32, #tpu.memory_space<vmem>>, %arg2: memref<2x32xf32, #tpu.memory_space<vmem>>, %arg3: memref<16x40xf32, #tpu.memory_space<vmem>>, %arg4: memref<32x40xf32, #tpu.memory_space<vmem>>, %arg5: memref<1x40xf32, #tpu.memory_space<vmem>>, %arg6: memref<2x8xf32, #tpu.memory_space<vmem>>, %arg7: memref<2x32xf32, #tpu.memory_space<vmem>>) attributes {dimension_semantics = [#tpu.dimension_semantics<parallel>], iteration_bounds = array<i64: 1>, scalar_prefetch = 0 : i64, scratch_operands = 0 : i64, tpu.core_type = #tpu.core_type<tc>, window_params = [{transform_indices = @transform_0, window_bounds = array<i64: 2, 16>}, {transform_indices = @transform_1, window_bounds = array<i64: 2, 32>}, {pipeline_mode = #tpu.pipeline_mode<synchronous>, transform_indices = @transform_2, window_bounds = array<i64: 16, 40>}, {pipeline_mode = #tpu.pipeline_mode<synchronous>, transform_indices = @transform_3, window_bounds = array<i64: 32, 40>}, {pipeline_mode = #tpu.pipeline_mode<synchronous>, transform_indices = @transform_4, window_bounds = array<i64: 1, 40>}, {transform_indices = @transform_5, window_bounds = array<i64: 2, 8>}, {transform_indices = @transform_6, window_bounds = array<i64: 2, 32>}]} {
    %c0 = arith.constant 0 : index
    %c0_0 = arith.constant 0 : index
    %0 = vector.load %arg1[%c0, %c0_0] : memref<2x16xf32, #tpu.memory_space<vmem>>, vector<2x16xf32>
    %c0_1 = arith.constant 0 : index
    %c0_2 = arith.constant 0 : index
    %1 = vector.load %arg3[%c0_1, %c0_2] : memref<16x40xf32, #tpu.memory_space<vmem>>, vector<16x40xf32>
    %cst = arith.constant dense<0.000000e+00> : vector<2x40xf32>
    %2 = tpu.matmul %0, %1, %cst {dimension_numbers = #tpu.dot_dimension_numbers<[1], [0], [0], [1], [0, 0, 1, 1], [], []>} : vector<2x16xf32>, vector<16x40xf32>, vector<2x40xf32> -> vector<2x40xf32>
    %c0_3 = arith.constant 0 : index
    %c0_4 = arith.constant 0 : index
    %3 = vector.load %arg2[%c0_3, %c0_4] : memref<2x32xf32, #tpu.memory_space<vmem>>, vector<2x32xf32>
    %c0_5 = arith.constant 0 : index
    %c0_6 = arith.constant 0 : index
    %4 = vector.load %arg4[%c0_5, %c0_6] : memref<32x40xf32, #tpu.memory_space<vmem>>, vector<32x40xf32>
    %cst_7 = arith.constant dense<0.000000e+00> : vector<2x40xf32>
    %5 = tpu.matmul %3, %4, %cst_7 {dimension_numbers = #tpu.dot_dimension_numbers<[1], [0], [0], [1], [0, 0, 1, 1], [], []>} : vector<2x32xf32>, vector<32x40xf32>, vector<2x40xf32> -> vector<2x40xf32>
    %6 = arith.addf %2, %5 : vector<2x40xf32>
    %c0_8 = arith.constant 0 : index
    %c0_9 = arith.constant 0 : index
    %7 = vector.load %arg5[%c0_8, %c0_9] : memref<1x40xf32, #tpu.memory_space<vmem>>, vector<1x40xf32>
    %8 = vector.broadcast %7 : vector<1x40xf32> to vector<2x40xf32>
    %9 = arith.addf %6, %8 : vector<2x40xf32>
    %10 = vector.extract_strided_slice %9 {offsets = [0, 0], sizes = [2, 32], strides = [1, 1]} : vector<2x40xf32> to vector<2x32xf32>
    %11 = vector.extract_strided_slice %9 {offsets = [0, 32], sizes = [2, 8], strides = [1, 1]} : vector<2x40xf32> to vector<2x8xf32>
    %c0_10 = arith.constant 0 : index
    %c0_11 = arith.constant 0 : index
    %12 = vector.load %arg7[%c0_10, %c0_11] : memref<2x32xf32, #tpu.memory_space<vmem>>, vector<2x32xf32>
    tpu.vector_store %arg7[%c0_10, %c0_11], %10 {strides = array<i32>} : memref<2x32xf32, #tpu.memory_space<vmem>>, vector<2x32xf32>,
    %cst_12 = arith.constant dense<0xFF800000> : vector<2xf32>
    %13 = vector.multi_reduction <maximumf>, %11, %cst_12 [1] : vector<2x8xf32> to vector<2xf32>
    %14 = vector.shape_cast %13 : vector<2xf32> to vector<2x1xf32>
    %15 = vector.broadcast %14 : vector<2x1xf32> to vector<2x8xf32>
    %16 = arith.subf %11, %15 : vector<2x8xf32>
    %17 = math.exp %16 : vector<2x8xf32>
    %cst_13 = arith.constant dense<0.000000e+00> : vector<2xf32>
    %18 = vector.multi_reduction <add>, %17, %cst_13 [1] : vector<2x8xf32> to vector<2xf32>
    %19 = vector.shape_cast %18 : vector<2xf32> to vector<2x1xf32>
    %20 = math.log %19 : vector<2x1xf32>
    %21 = vector.broadcast %20 : vector<2x1xf32> to vector<2x8xf32>
    %22 = arith.subf %16, %21 : vector<2x8xf32>
    %c0_14 = arith.constant 0 : index
    %c0_15 = arith.constant 0 : index
    %23 = vector.load %arg6[%c0_14, %c0_15] : memref<2x8xf32, #tpu.memory_space<vmem>>, vector<2x8xf32>
    tpu.vector_store %arg6[%c0_14, %c0_15], %22 {strides = array<i32>} : memref<2x8xf32, #tpu.memory_space<vmem>>, vector<2x8xf32>,
    return
  }
  func.func @transform_0(%arg0: i32) -> (i32, i32) {
    %c0_i32 = arith.constant 0 : i32
    %c0_i32_0 = arith.constant 0 : i32
    return %arg0, %c0_i32 : i32, i32
  }
  func.func @transform_1(%arg0: i32) -> (i32, i32) {
    %c0_i32 = arith.constant 0 : i32
    %c0_i32_0 = arith.constant 0 : i32
    return %arg0, %c0_i32 : i32, i32
  }
  func.func @transform_2(%arg0: i32) -> (i32, i32) {
    %c0_i32 = arith.constant 0 : i32
    %c0_i32_0 = arith.constant 0 : i32
    %c0_i32_1 = arith.constant 0 : i32
    return %c0_i32, %c0_i32_0 : i32, i32
  }
  func.func @transform_3(%arg0: i32) -> (i32, i32) {
    %c0_i32 = arith.constant 0 : i32
    %c0_i32_0 = arith.constant 0 : i32
    %c0_i32_1 = arith.constant 0 : i32
    return %c0_i32, %c0_i32_0 : i32, i32
  }
  func.func @transform_4(%arg0: i32) -> (i32, i32) {
    %c0_i32 = arith.constant 0 : i32
    %c0_i32_0 = arith.constant 0 : i32
    %c0_i32_1 = arith.constant 0 : i32
    return %c0_i32, %c0_i32_0 : i32, i32
  }
  func.func @transform_5(%arg0: i32) -> (i32, i32) {
    %c0_i32 = arith.constant 0 : i32
    %c0_i32_0 = arith.constant 0 : i32
    return %arg0, %c0_i32 : i32, i32
  }
  func.func @transform_6(%arg0: i32) -> (i32, i32) {
    %c0_i32 = arith.constant 0 : i32
    %c0_i32_0 = arith.constant 0 : i32
    return %arg0, %c0_i32 : i32, i32
  }
}

</mosaic_0001>

<llo_original>
// kernel: tpu_custom_call.1
$region0: #{tpu_custom_call.1}
  #allocation0 [shape = 'u32[]', space=smem, size = 0x4, offset = 0x4, fixed_abs, tag = 'smem constant byte address 0x4 - core index']
  #allocation1 [shape = 'u32[144,128]{1,0:T(1,128)}', space=vmem, size = 0x12000, scoped, tag = 'internal scratch']
  %s0 = inlined_call_operand.hbm [shape: f32[2,16], index: 0, kind: input, shape index: {}]
  %s1 = inlined_call_operand.vmem [shape: f32[2,32], index: 1, kind: input, shape index: {}]
  %s2 = inlined_call_operand.hbm [shape: f32[16,40], index: 2, kind: input, shape index: {}]
  %s3 = inlined_call_operand.hbm [shape: f32[32,40], index: 3, kind: input, shape index: {}]
  %s4 = inlined_call_operand.vmem [shape: f32[1,40], index: 4, kind: input, shape index: {}]
  %s5 = inlined_call_operand.hbm [shape: f32[2,8], index: 5, kind: output, shape index: {0}]
  %s6 = inlined_call_operand.hbm [shape: f32[2,32], index: 6, kind: output, shape index: {1}]
  %7 = xla_tuple %s5, %s6
  %s8 = sld [smem:[#allocation0]]
  $region50: #{tpu_custom_call.1} parent=0
    _
  %s10 = ssub.s32 1, %s8
  %s11 = scalar_select 0, %s10, %s8
  $region1: #{tpu_custom_call.1} parent=0
    #allocation2 [shape = 'u8[1024]{0}', space=vmem, size = 0x400, scoped, tag = 'input window, operand 0, single buffered']
    #allocation3 [shape = 's32[1]{0}', space=sflag, size = 0x4, scoped, tag = 'scoped memory for tpu_custom_call.1']
    #allocation4 [shape = 's32[1]{0}', space=sflag, size = 0x4, scoped, tag = 'scoped memory for tpu_custom_call.1']
    #allocation5 [shape = 'u8[8192]{0}', space=vmem, size = 0x2000, scoped, tag = 'input window, operand 2, single buffered']
    #allocation6 [shape = 's32[1]{0}', space=sflag, size = 0x4, scoped, tag = 'scoped memory for tpu_custom_call.1']
    #allocation7 [shape = 'u8[16384]{0}', space=vmem, size = 0x4000, scoped, tag = 'input window, operand 3, single buffered']
    #allocation8 [shape = 'u8[1024]{0}', space=vmem, size = 0x400, scoped, tag = 'output window, operand 0, single buffered']
    #allocation9 [shape = 'u8[1024]{0}', space=vmem, size = 0x400, scoped, tag = 'output window, operand 1, single buffered']
    #allocation10 [shape = 's32[1]{0}', space=sflag, size = 0x4, scoped, tag = 'scoped memory for tpu_custom_call.1']
    %12 = vsyncpa [#allocation3], 0
    %13 = vsyncpa [#allocation6], 0
    %14 = vsyncpa [#allocation4], 0
    %15 = vsyncpa [#allocation10], 0
    // Predicated region
    $region2: #{tpu_custom_call.1} parent=1 // pred_check
      _
    $region3: #{tpu_custom_call.1} parent=1 // pred_check_branch
      %17 = sbr.rel (0) target = $region5
    $region4: #{tpu_custom_call.1} parent=1 // pred_region
      %s19 = ssub.s32 32, 32
      %20 = vsyncadd [#allocation3], %s19
      %s22 = sshll.u32 [#allocation2], 4
      %s23 = int_to_ptr.vmem [resolvable:$true] %s22
      %25 = dma.hbm_to_vmem [thread:$0]  %s0, 32, %s23, [#allocation3]
    $region5: #{tpu_custom_call.1} parent=1 // pred_fallthru
      _
    // Predicated region
    $region6: #{tpu_custom_call.1} parent=1 // pred_check
      _
    $region7: #{tpu_custom_call.1} parent=1 // pred_check_branch
      %27 = sbr.rel (0) target = $region9
    $region8: #{tpu_custom_call.1} parent=1 // pred_region
      _
    $region9: #{tpu_custom_call.1} parent=1 // pred_fallthru
      _
    // Predicated region
    $region10: #{tpu_custom_call.1} parent=1 // pred_check
      _
    $region11: #{tpu_custom_call.1} parent=1 // pred_check_branch
      %29 = sbr.rel (0) target = $region13
    $region12: #{tpu_custom_call.1} parent=1 // pred_region
      %s31 = ssub.s32 256, 256
      %32 = vsyncadd [#allocation6], %s31
      %s33 = sshll.u32 [#allocation5], 4
      %s34 = int_to_ptr.vmem [resolvable:$true] %s33
      %39 = dma.hbm_to_vmem [thread:$0]  %s2, 256, %s34, [#allocation6], 128, 128, 8
    $region13: #{tpu_custom_call.1} parent=1 // pred_fallthru
      _
    // Predicated region
    $region14: #{tpu_custom_call.1} parent=1 // pred_check
      _
    $region15: #{tpu_custom_call.1} parent=1 // pred_check_branch
      %41 = sbr.rel (0) target = $region17
    $region16: #{tpu_custom_call.1} parent=1 // pred_region
      %s43 = ssub.s32 512, 512
      %44 = vsyncadd [#allocation6], %s43
      %s45 = sshll.u32 [#allocation7], 4
      %s46 = int_to_ptr.vmem [resolvable:$true] %s45
      %51 = dma.hbm_to_vmem [thread:$0]  %s3, 512, %s46, [#allocation6], 128, 128, 8
    $region17: #{tpu_custom_call.1} parent=1 // pred_fallthru
      _
    // Predicated region
    $region18: #{tpu_custom_call.1} parent=1 // pred_check
      _
    $region19: #{tpu_custom_call.1} parent=1 // pred_check_branch
      %53 = sbr.rel (0) target = $region21
    $region20: #{tpu_custom_call.1} parent=1 // pred_region
      _
    $region21: #{tpu_custom_call.1} parent=1 // pred_fallthru
      _
    // Predicated region
    $region22: #{tpu_custom_call.1} parent=1 // pred_check
      _
    $region23: #{tpu_custom_call.1} parent=1 // pred_check_branch
      %55 = sbr.rel (0) target = $region25
    $region24: #{tpu_custom_call.1} parent=1 // pred_region
      %56 = dma.done [#allocation3], 32
    $region25: #{tpu_custom_call.1} parent=1 // pred_fallthru
      _
    // Predicated region
    $region26: #{tpu_custom_call.1} parent=1 // pred_check
      _
    $region27: #{tpu_custom_call.1} parent=1 // pred_check_branch
      %58 = sbr.rel (0) target = $region29
    $region28: #{tpu_custom_call.1} parent=1 // pred_region
      %59 = dma.done [#allocation6], 256
    $region29: #{tpu_custom_call.1} parent=1 // pred_fallthru
      _
    // Predicated region
    $region30: #{tpu_custom_call.1} parent=1 // pred_check
      _
    $region31: #{tpu_custom_call.1} parent=1 // pred_check_branch
      %61 = sbr.rel (0) target = $region33
    $region32: #{tpu_custom_call.1} parent=1 // pred_region
      %62 = dma.done [#allocation6], 512
    $region33: #{tpu_custom_call.1} parent=1 // pred_fallthru
      _
    %v63 = vld [vmem:[#allocation2] sm:$0x3]
    %v64 = vld [vmem:[#allocation5] sm:$0xff]
    %v65 = vld [vmem:[#allocation5 + $0x8] sm:$0xff]
    %v66 = vld [vmem:[%s1] sm:$0x3]
    %v67 = vld [vmem:[#allocation7] sm:$0xff]
    %v68 = vld [vmem:[#allocation7 + $0x8] sm:$0xff]
    %v69 = vld [vmem:[#allocation7 + $0x10] sm:$0xff]
    %v70 = vld [vmem:[#allocation7 + $0x18] sm:$0xff]
    %vm71 = vcmask 261120
    %v73 = vsel %vm71, %v66, 0
    %75 = vmatprep.subr.mxu0 0.0
    %76 = vmatpush1.msra.mxu0 %v67
    %77 = vmatprep.subr.mxu0 0.0
    %78 = vmatpush1.msra.mxu0 %v68
    %79 = vmatprep.subr.mxu0 0.0
    %80 = vmatpush1.msra.mxu0 %v69
    %81 = vmatprep.subr.mxu0 0.0
    %82 = vmatpush1.msra.mxu0 %v70
    %83 = vmatprep.subr.mxu0 0.0
    %84 = vmatpush1.msra.mxu0 0.0
    %85 = vmatprep.subr.mxu0 0.0
    %86 = vmatpush1.msra.mxu0 0.0
    %87 = vmatprep.subr.mxu0 0.0
    %88 = vmatpush1.msra.mxu0 0.0
    %89 = vmatprep.subr.mxu0 0.0
    %90 = vmatpush1.msra.mxu0 0.0
    %91 = vmatprep.subr.mxu0 0.0
    %92 = vmatpush1.msra.mxu0 0.0
    %93 = vmatprep.subr.mxu0 0.0
    %94 = vmatpush1.msra.mxu0 0.0
    %95 = vmatprep.subr.mxu0 0.0
    %96 = vmatpush1.msra.mxu0 0.0
    %97 = vmatprep.subr.mxu0 0.0
    %98 = vmatpush1.msra.mxu0 0.0
    %99 = vmatprep.subr.mxu0 0.0
    %100 = vmatpush1.msra.mxu0 0.0
    %101 = vmatprep.subr.mxu0 0.0
    %102 = vmatpush1.msra.mxu0 0.0
    %103 = vmatprep.subr.mxu0 0.0
    %104 = vmatpush1.msra.mxu0 0.0
    %105 = vmatprep.subr.mxu0 0.0
    %106 = vmatpush1.msra.mxu0 0.0
    %107 = vmatprep.subr.mxu0 0.0
    %108 = vmatpush1.msra.mxu0 0.0
    %109 = vmatprep.subr.mxu0 0.0
    %110 = vmatpush1.msra.mxu0 0.0
    %111 = vmatprep.subr.mxu0 0.0
    %112 = vmatpush1.msra.mxu0 0.0
    %113 = vmatprep.subr.mxu0 0.0
    %114 = vmatpush1.msra.mxu0 0.0
    %115 = vmatprep.subr.mxu0 0.0
    %116 = vmatpush1.msra.mxu0 0.0
    %117 = vmatprep.subr.mxu0 0.0
    %118 = vmatpush1.msra.mxu0 0.0
    %119 = vmatprep.subr.mxu0 0.0
    %120 = vmatpush1.msra.mxu0 0.0
    %121 = vmatprep.subr.mxu0 0.0
    %122 = vmatpush1.msra.mxu0 0.0
    %123 = vmatprep.subr.mxu0 0.0
    %124 = vmatpush1.msra.mxu0 0.0
    %125 = vmatprep.subr.mxu0 0.0
    %126 = vmatpush1.msra.mxu0 0.0
    %127 = vmatprep.subr.mxu0 0.0
    %128 = vmatpush1.msra.mxu0 0.0
    %129 = vmatprep.subr.mxu0 0.0
    %130 = vmatpush1.msra.mxu0 0.0
    %131 = vmatprep.subr.mxu0 0.0
    %132 = vmatpush1.msra.mxu0 0.0
    %133 = vmatprep.subr.mxu0 0.0
    %134 = vmatpush1.msra.mxu0 0.0
    %135 = vmatprep.subr.mxu0 0.0
    %136 = vmatpush1.msra.mxu0 0.0
    %137 = vmatprep.subr.mxu0 0.0
    %138 = vmatpush1.msra.mxu0 0.0
    %139 = vmatprep.mubr.f32.mxu0 0.0
    %140 = vmatmul.mubr.f32.gmra.mrb[0].mxu0 %v73
    %v141 = vpop.f32.mrb[0].mxu0
    %v142 = vadd.f32 0.0, %v141
    %v143 = vpop.f32.mrb[0].mxu0
    %144 = vdwg.mxu0
    %vm145 = vcmask 130048
    %v147 = vsel %vm145, %v63, 0
    %149 = vmatprep.subr.mxu0 0.0
    %150 = vmatpush1.msra.mxu0 %v64
    %151 = vmatprep.subr.mxu0 0.0
    %152 = vmatpush1.msra.mxu0 %v65
    %153 = vmatprep.subr.mxu0 0.0
    %154 = vmatpush1.msra.mxu0 0.0
    %155 = vmatprep.subr.mxu0 0.0
    %156 = vmatpush1.msra.mxu0 0.0
    %157 = vmatprep.subr.mxu0 0.0
    %158 = vmatpush1.msra.mxu0 0.0
    %159 = vmatprep.subr.mxu0 0.0
    %160 = vmatpush1.msra.mxu0 0.0
    %161 = vmatprep.subr.mxu0 0.0
    %162 = vmatpush1.msra.mxu0 0.0
    %163 = vmatprep.subr.mxu0 0.0
    %164 = vmatpush1.msra.mxu0 0.0
    %165 = vmatprep.subr.mxu0 0.0
    %166 = vmatpush1.msra.mxu0 0.0
    %167 = vmatprep.subr.mxu0 0.0
    %168 = vmatpush1.msra.mxu0 0.0
    %169 = vmatprep.subr.mxu0 0.0
    %170 = vmatpush1.msra.mxu0 0.0
    %171 = vmatprep.subr.mxu0 0.0
    %172 = vmatpush1.msra.mxu0 0.0
    %173 = vmatprep.subr.mxu0 0.0
    %174 = vmatpush1.msra.mxu0 0.0
    %175 = vmatprep.subr.mxu0 0.0
    %176 = vmatpush1.msra.mxu0 0.0
    %177 = vmatprep.subr.mxu0 0.0
    %178 = vmatpush1.msra.mxu0 0.0
    %179 = vmatprep.subr.mxu0 0.0
    %180 = vmatpush1.msra.mxu0 0.0
    %181 = vmatprep.subr.mxu0 0.0
    %182 = vmatpush1.msra.mxu0 0.0
    %183 = vmatprep.subr.mxu0 0.0
    %184 = vmatpush1.msra.mxu0 0.0
    %185 = vmatprep.subr.mxu0 0.0
    %186 = vmatpush1.msra.mxu0 0.0
    %187 = vmatprep.subr.mxu0 0.0
    %188 = vmatpush1.msra.mxu0 0.0
    %189 = vmatprep.subr.mxu0 0.0
    %190 = vmatpush1.msra.mxu0 0.0
    %191 = vmatprep.subr.mxu0 0.0
    %192 = vmatpush1.msra.mxu0 0.0
    %193 = vmatprep.subr.mxu0 0.0
    %194 = vmatpush1.msra.mxu0 0.0
    %195 = vmatprep.subr.mxu0 0.0
    %196 = vmatpush1.msra.mxu0 0.0
    %197 = vmatprep.subr.mxu0 0.0
    %198 = vmatpush1.msra.mxu0 0.0
    %199 = vmatprep.subr.mxu0 0.0
    %200 = vmatpush1.msra.mxu0 0.0
    %201 = vmatprep.subr.mxu0 0.0
    %202 = vmatpush1.msra.mxu0 0.0
    %203 = vmatprep.subr.mxu0 0.0
    %204 = vmatpush1.msra.mxu0 0.0
    %205 = vmatprep.subr.mxu0 0.0
    %206 = vmatpush1.msra.mxu0 0.0
    %207 = vmatprep.subr.mxu0 0.0
    %208 = vmatpush1.msra.mxu0 0.0
    %209 = vmatprep.subr.mxu0 0.0
    %210 = vmatpush1.msra.mxu0 0.0
    %211 = vmatprep.subr.mxu0 0.0
    %212 = vmatpush1.msra.mxu0 0.0
    %213 = vmatprep.mubr.f32.mxu0 0.0
    %214 = vmatmul.mubr.f32.gmra.mrb[0].mxu0 %v147
    %v215 = vpop.f32.mrb[0].mxu0
    %v216 = vadd.f32 %v142, %v215
    %v217 = vpop.f32.mrb[0].mxu0
    %218 = vdwg.mxu0
    %v219 = vld [vmem:[%s4] sm:$0x1]
    %v221 = vlaneseq
    %v222 = vshrl.u32 %v221, 7
    %v223 = vsub.s32 0, %v222
    %v224 = vrot.slane %v219, %v223
    %v226 = vadd.f32 %v216, %v224
    %vm227 = vcmask 254976
    %228 = vst.msk [vmem:[#allocation9] sm:$0x3] %vm227, %v226
    %vm229 = vcmask 320768
    %v230 = vsel %vm229, %v226, -inf
    %231 = vmax.xlane.f32.xlu0 %v230
    %v232 = vpop.xlane.xlu0 %231
    %v233 = vsub.f32 %v226, %v232
    %v234 = vmul.f32 %v233, 1.442695
    %v235 = vpow.pop %v234
    %237 = vrot.lane.b32.xlu0 %v235, 96
    %v238 = vpop.permute.xlu0 %237
    %vm240 = vcmask 58368
    %v241 = vsel %vm240, %v238, 0.0
    %242 = vadd.xlane.f32.xlu0 %v241
    %v243 = vpop.xlane.xlu0 %242
    %v244 = vlog2.pop %v243
    %v245 = vmul.f32 %v244, 0.6931472
    %v246 = vsub.f32 %v233, %v245
    %248 = vrot.lane.b32.xlu0 %v246, 96
    %v249 = vpop.permute.xlu0 %248
    %251 = vst.msk [vmem:[#allocation8] sm:$0x3] %vm240, %v249
    // Predicated region
    $region34: #{tpu_custom_call.1} parent=1 // pred_check
      _
    $region35: #{tpu_custom_call.1} parent=1 // pred_check_branch
      %253 = sbr.rel (0) target = $region37
    $region36: #{tpu_custom_call.1} parent=1 // pred_region
      %s255 = ssub.s32 32, 32
      %256 = vsyncadd [#allocation4], %s255
      %s258 = sshll.u32 [#allocation8], 4
      %s259 = int_to_ptr.vmem [resolvable:$true] %s258
      %261 = dma.vmem_to_hbm [thread:$0]  %s259, 32, %s5, [#allocation4]
    $region37: #{tpu_custom_call.1} parent=1 // pred_fallthru
      _
    // Predicated region
    $region38: #{tpu_custom_call.1} parent=1 // pred_check
      _
    $region39: #{tpu_custom_call.1} parent=1 // pred_check_branch
      %263 = sbr.rel (0) target = $region41
    $region40: #{tpu_custom_call.1} parent=1 // pred_region
      %s265 = ssub.s32 32, 32
      %266 = vsyncadd [#allocation10], %s265
      %s268 = sshll.u32 [#allocation9], 4
      %s269 = int_to_ptr.vmem [resolvable:$true] %s268
      %271 = dma.vmem_to_hbm [thread:$0]  %s269, 32, %s6, [#allocation10]
    $region41: #{tpu_custom_call.1} parent=1 // pred_fallthru
      _
    // Predicated region
    $region42: #{tpu_custom_call.1} parent=1 // pred_check
      _
    $region43: #{tpu_custom_call.1} parent=1 // pred_check_branch
      %273 = sbr.rel (0) target = $region45
    $region44: #{tpu_custom_call.1} parent=1 // pred_region
      %274 = dma.done [#allocation4], 32
    $region45: #{tpu_custom_call.1} parent=1 // pred_fallthru
      _
    // Predicated region
    $region46: #{tpu_custom_call.1} parent=1 // pred_check
      _
    $region47: #{tpu_custom_call.1} parent=1 // pred_check_branch
      %276 = sbr.rel (0) target = $region49
    $region48: #{tpu_custom_call.1} parent=1 // pred_region
      %277 = dma.done [#allocation10], 32
    $region49: #{tpu_custom_call.1} parent=1 // pred_fallthru
      _
    %278 = vsyncpa [#allocation3], 1
    %279 = vsyncpa [#allocation6], 1
    %280 = vsyncpa [#allocation4], 1
    %281 = vsyncpa [#allocation10], 1

</llo_original>
